<compile_context>
chip_gen: v5e
topology: v5e:2x2
jax: 0.10.0
libtpu: 0.0.40
codegen_flags: <defaults>
</compile_context>

<pallas_src>
import math

import jax
import jax.numpy as jnp
from jax.experimental import pallas as pl
from jax.experimental.pallas import tpu as pltpu


_TW_MAX = 32 * 1024        # max lanes per time tile
_TARGET_ELEMS = 1 << 20    # ~1M elements per tile (~4 MiB f32 output tile)


def _make_sampling_kernel(rate: int, shift: int, width: int, native: bool):
    """Fused decimate(rate, shift) + zero-order-hold upsample on one (tm, width) tile.

    out[t] = x[t - (t % rate) + shift], with width % rate == 0 and 0 <= shift < rate.
    Uses ceil(log2(rate)) lane rolls (XLU) + selects (VPU) via a doubling hold broadcast.
    """
    assert width % rate == 0 and 0 <= shift < rate
    n_steps = (rate - 1).bit_length()  # ceil(log2(rate)); 0 when rate == 1

    def kernel(x_ref, o_ref):
        x = x_ref[...]
        if not native:                      # exotic dtypes: promote once, in VMEM
            x = x.astype(jnp.float32)
        if rate == 1:
            o_ref[...] = x.astype(jnp.float32)
            return
        # y0[t] = x[t + shift]   (circular; wrapped lanes are never selected below)
        y = x if shift == 0 else pltpu.roll(x, shift=width - shift, axis=1)
        # Lane-only phase pattern (1, width); jnp.where broadcasts it along sublanes.
        lane = jax.lax.broadcasted_iota(jnp.int32, (1, width), 1)
        lane_mod = lane % rate
        # Doubling hold: after step k, y[t] = y0[t - min(t % rate, 2^(k+1) - 1)].
        for k in range(n_steps):
            step = 1 << k
            y = jnp.where(lane_mod >= step, pltpu.roll(y, shift=step, axis=1), y)
        # Cast to f32 only at the final lane-dense store.
        o_ref[...] = y.astype(jnp.float32)

    return kernel


def _plan_tiles(rows: int, width: int, rate: int):
    """Pick (row_tile, time_tile).

    Time tile is a multiple of rate (chunk-local phase pattern) and of 128 (lane-dense,
    unmasked stores) unless it equals the full width.  Row tile is a multiple of 8 sublanes
    (or the full row count) sized so double-buffered in+out tiles stay well under scoped VMEM
    on v5e/v6e/v7x.
    """
    if width <= _TW_MAX:
        tw = width
    else:
        base = (rate * 128) // math.gcd(rate, 128)        # lcm(rate, 128)
        tw = min(width, base) if base >= _TW_MAX else (_TW_MAX // base) * base

    if rows <= 8:
        tm = rows
    else:
        tm = max(8, min(rows, _TARGET_ELEMS // max(tw, 1)))
        tm = (tm // 8) * 8
    return tm, tw


class Sampling:
    """JAX/Pallas port of model/first_stage/sampling.py::Sampling."""

    def __init__(self, sampling_rate: int, input_size: int, shift: int = 0):
        # TODO(synk): general-shift semantics of downsample_time_series unknown; assume
        #             0 <= shift < sampling_rate (standard decimation offset).
        assert 0 <= shift < sampling_rate
        self.sampling_rate = sampling_rate
        self.input_size = input_size
        self.shift = shift
        self.latent_size = input_size // sampling_rate
        self.output_size = self.latent_size * sampling_rate

    # --- pure-JAX glue (not hot compute) --------------------------------------
    def encode(self, x):
        return x[..., self.shift :: self.sampling_rate][..., : self.latent_size]

    def get_latent(self, x):
        return self.encode(x)

    def decode(self, z):
        return jnp.repeat(z, self.sampling_rate, axis=-1).astype(jnp.float32)

    # --- fused Pallas forward ---------------------------------------------------
    def __call__(self, x):
        return self.forward(x)

    def forward(self, x):
        assert x.shape[-1] == self.input_size
        assert self.latent_size >= 1, "input_size must be >= sampling_rate"
        rate, shift = self.sampling_rate, self.shift
        lead = x.shape[:-1]
        rows = math.prod(lead) if lead else 1
        width = self.output_size

        x2d = x.reshape(rows, self.input_size)  # keep native dtype (no extra HBM pass)
        if self.input_size != width:
            # Rare non-divisible tail: drop it in the wrapper so the kernel never slices
            # the lane axis inside the hot body.
            x2d = x2d[:, :width]

        # Fold time into rows when rows is tiny: fixes sublane utilization (rows < 8) and
        # gives the parallel grid more steps for v7x's two TensorCores.  Legal because each
        # folded row width stays a multiple of rate (zero-order hold is chunk-local).
        r_eff, w_eff = rows, width
        while (r_eff < 8 and w_eff % 2 == 0 and (w_eff // 2) % rate == 0
               and (w_eff // 2) >= 256):
            r_eff *= 2
            w_eff //= 2
        if (r_eff, w_eff) != (rows, width):
            x2d = x2d.reshape(r_eff, w_eff)

        tm, tw = _plan_tiles(r_eff, w_eff, rate)
        grid = (pl.cdiv(r_eff, tm), pl.cdiv(w_eff, tw))

        native = x2d.dtype in (jnp.float32, jnp.bfloat16)
        in_tile = tm * tw * x2d.dtype.itemsize
        out_tile = tm * tw * 4
        # 2x double-buffered in+out tiles + in-kernel temporaries + slack, capped under
        # v7x's 64 MiB physical VMEM (v5e/v6e have 128 MiB physical).
        vmem_limit = int(min(max(2 * (in_tile + out_tile) + 2 * in_tile + out_tile
                                 + (8 << 20), 32 << 20), 48 << 20))

        cost = pl.CostEstimate(
            flops=0, transcendentals=0,
            bytes_accessed=r_eff * w_eff * (x2d.dtype.itemsize + 4))

        out2d = pl.pallas_call(
            _make_sampling_kernel(rate, shift, tw, native),
            out_shape=jax.ShapeDtypeStruct((r_eff, w_eff), jnp.float32),
            grid_spec=pltpu.PrefetchScalarGridSpec(
                num_scalar_prefetch=0,
                grid=grid,
                in_specs=[pl.BlockSpec((tm, tw), lambda i, j: (i, j))],
                out_specs=pl.BlockSpec((tm, tw), lambda i, j: (i, j)),
            ),
            compiler_params=pltpu.CompilerParams(
                dimension_semantics=("parallel", "parallel"),
                vmem_limit_bytes=vmem_limit,
            ),
            cost_estimate=cost,
        )(x2d)

        y = out2d.reshape(*lead, width) if lead else out2d.reshape(width)
        return (y,)


def _reference_forward(x, rate, shift):
    latent = x[..., shift::rate][..., : x.shape[-1] // rate]
    return jnp.repeat(latent, rate, axis=-1).astype(jnp.float32)


def _check(key, shape, dtype, rate, shift):
    x = jax.random.normal(key, shape, dtype=dtype)
    mod = Sampling(sampling_rate=rate, input_size=shape[-1], shift=shift)
    (y,) = mod(x)
    y = jax.block_until_ready(y)
    ref = _reference_forward(x, rate, shift)
    assert y.shape == ref.shape and y.dtype == jnp.float32, (y.shape, ref.shape, y.dtype)
    assert jnp.allclose(y, ref, atol=1e-6), (
        f"mismatch vs reference: shape={shape} dtype={dtype} rate={rate} shift={shift}")


if __name__ == "__main__":
    keys = jax.random.split(jax.random.PRNGKey(0), 5)
    _check(keys[0], (2, 4, 128), jnp.float32, 4, 0)    # basic f32, shift=0
    _check(keys[1], (2, 8, 256), jnp.bfloat16, 4, 2)   # bf16 native-dtype path, nonzero shift
    _check(keys[2], (1, 3, 130), jnp.bfloat16, 4, 3)   # T % rate != 0 (wrapper tail drop)
    _check(keys[3], (2, 2, 192), jnp.float32, 3, 1)    # non-power-of-2 rate, width % 128 != 0
    _check(keys[4], (1, 2, 512), jnp.float32, 8, 3)    # tiny row count -> time->row fold path
    print("KERNEL_OK")
</pallas_src>

<mosaic_0001>
module attributes {stable_mosaic.version = 11 : i64} {
  func.func @kernel(%arg0: i32, %arg1: i32, %arg2: memref<8x128xf32, #tpu.memory_space<vmem>>, %arg3: memref<8x128xf32, #tpu.memory_space<vmem>>) attributes {dimension_semantics = [#tpu.dimension_semantics<parallel>, #tpu.dimension_semantics<parallel>], iteration_bounds = array<i64: 1, 1>, scalar_prefetch = 0 : i64, scratch_operands = 0 : i64, tpu.core_type = #tpu.core_type<tc>, window_params = [{transform_indices = @transform_0, window_bounds = array<i64: 8, 128>}, {transform_indices = @transform_1, window_bounds = array<i64: 8, 128>}]} {
    %c0 = arith.constant 0 : index
    %c0_0 = arith.constant 0 : index
    %0 = vector.load %arg2[%c0, %c0_0] : memref<8x128xf32, #tpu.memory_space<vmem>>, vector<8x128xf32>
    %1 = tpu.iota {dimensions = array<i32: 1>} : vector<1x128xi32>
    %c4_i32 = arith.constant 4 : i32
    %c0_i32 = arith.constant 0 : i32
    %2 = arith.cmpi eq, %c4_i32, %c0_i32 : i32
    %c1_i32 = arith.constant 1 : i32
    %3 = arith.select %2, %c1_i32, %c4_i32 : i32
    %4 = vector.broadcast %3 : i32 to vector<1x128xi32>
    %5 = arith.remsi %1, %4 : vector<1x128xi32>
    %c0_i32_1 = arith.constant 0 : i32
    %6 = vector.broadcast %c0_i32_1 : i32 to vector<1x128xi32>
    %7 = arith.cmpi ne, %5, %6 : vector<1x128xi32>
    %c0_i32_2 = arith.constant 0 : i32
    %8 = vector.broadcast %c0_i32_2 : i32 to vector<1x128xi32>
    %9 = arith.cmpi slt, %5, %8 : vector<1x128xi32>
    %c0_i32_3 = arith.constant 0 : i32
    %10 = arith.cmpi slt, %3, %c0_i32_3 : i32
    %11 = vector.broadcast %10 : i1 to vector<1x128xi1>
    %12 = vector.broadcast %11 : vector<1x128xi1> to vector<1x128xi1>
    %13 = arith.xori %9, %12 : vector<1x128xi1>
    %14 = arith.andi %13, %7 : vector<1x128xi1>
    %15 = vector.broadcast %3 : i32 to vector<1x128xi32>
    %16 = arith.addi %5, %15 : vector<1x128xi32>
    %17 = arith.select %14, %16, %5 : vector<1x128xi1>, vector<1x128xi32>
    %c1_i32_4 = arith.constant 1 : i32
    %18 = vector.broadcast %c1_i32_4 : i32 to vector<1x128xi32>
    %19 = arith.cmpi sge, %17, %18 : vector<1x128xi32>
    %c1_i32_5 = arith.constant 1 : i32
    %20 = tpu.dynamic_rotate %0 by %c1_i32_5 dim 1 : vector<8x128xf32>, i32 -> vector<8x128xf32>
    %21 = vector.shape_cast %19 : vector<1x128xi1> to vector<1x128xi1>
    %22 = vector.broadcast %21 : vector<1x128xi1> to vector<8x128xi1>
    %23 = arith.select %22, %20, %0 : vector<8x128xi1>, vector<8x128xf32>
    %c2_i32 = arith.constant 2 : i32
    %24 = vector.broadcast %c2_i32 : i32 to vector<1x128xi32>
    %25 = arith.cmpi sge, %17, %24 : vector<1x128xi32>
    %c2_i32_6 = arith.constant 2 : i32
    %26 = tpu.dynamic_rotate %23 by %c2_i32_6 dim 1 : vector<8x128xf32>, i32 -> vector<8x128xf32>
    %27 = vector.shape_cast %25 : vector<1x128xi1> to vector<1x128xi1>
    %28 = vector.broadcast %27 : vector<1x128xi1> to vector<8x128xi1>
    %29 = arith.select %28, %26, %23 : vector<8x128xi1>, vector<8x128xf32>
    %c0_7 = arith.constant 0 : index
    %c0_8 = arith.constant 0 : index
    %30 = vector.load %arg3[%c0_7, %c0_8] : memref<8x128xf32, #tpu.memory_space<vmem>>, vector<8x128xf32>
    tpu.vector_store %arg3[%c0_7, %c0_8], %29 {strides = array<i32>} : memref<8x128xf32, #tpu.memory_space<vmem>>, vector<8x128xf32>,
    return
  }
  func.func @transform_0(%arg0: i32, %arg1: i32) -> (i32, i32) {
    %c0_i32 = arith.constant 0 : i32
    return %arg0, %arg1 : i32, i32
  }
  func.func @transform_1(%arg0: i32, %arg1: i32) -> (i32, i32) {
    %c0_i32 = arith.constant 0 : i32
    return %arg0, %arg1 : i32, i32
  }
}

</mosaic_0001>

<llo_original>
// kernel: tpu_custom_call.1
$region0: #{tpu_custom_call.1}
  #allocation0 [shape = 'u32[]', space=smem, size = 0x4, offset = 0x4, fixed_abs, tag = 'smem constant byte address 0x4 - core index']
  #allocation1 [shape = 'u32[72,128]{1,0:T(1,128)}', space=vmem, size = 0x9000, scoped, tag = 'internal scratch']
  %s0 = inlined_call_operand.hbm [shape: f32[8,128], index: 0, kind: input, shape index: {}]
  %s1 = inlined_call_operand.hbm [shape: f32[8,128], index: 1, kind: output, shape index: {}]
  %s2 = sld [smem:[#allocation0]]
  $region18: #{tpu_custom_call.1} parent=0
    _
  %s4 = ssub.s32 1, %s2
  %s5 = scalar_select 0, %s4, %s2
  $region1: #{tpu_custom_call.1} parent=0
    #allocation2 [shape = 'u8[4096]{0}', space=vmem, size = 0x1000, scoped, tag = 'input window, operand 0, single buffered']
    #allocation3 [shape = 's32[1]{0}', space=sflag, size = 0x4, scoped, tag = 'scoped memory for tpu_custom_call.1']
    #allocation4 [shape = 's32[1]{0}', space=sflag, size = 0x4, scoped, tag = 'scoped memory for tpu_custom_call.1']
    #allocation5 [shape = 'u8[4096]{0}', space=vmem, size = 0x1000, scoped, tag = 'output window, operand 0, single buffered']
    %6 = vsyncpa [#allocation3], 0
    %7 = vsyncpa [#allocation4], 0
    // Predicated region
    $region2: #{tpu_custom_call.1} parent=1 // pred_check
      _
    $region3: #{tpu_custom_call.1} parent=1 // pred_check_branch
      %9 = sbr.rel (0) target = $region5
    $region4: #{tpu_custom_call.1} parent=1 // pred_region
      %11 = vsyncadd [#allocation3], 0
      %s13 = sshll.u32 %s0, 4
      %s14 = int_to_ptr.hbm [resolvable:$true] %s13
      %s15 = sshll.u32 [#allocation2], 4
      %s16 = int_to_ptr.vmem [resolvable:$true] %s15
      %18 = dma.hbm_to_vmem [thread:$0]  %s14, 128, %s16, [#allocation3]
    $region5: #{tpu_custom_call.1} parent=1 // pred_fallthru
      _
    // Predicated region
    $region6: #{tpu_custom_call.1} parent=1 // pred_check
      _
    $region7: #{tpu_custom_call.1} parent=1 // pred_check_branch
      %20 = sbr.rel (0) target = $region9
    $region8: #{tpu_custom_call.1} parent=1 // pred_region
      %22 = dma.done [#allocation3], 128
    $region9: #{tpu_custom_call.1} parent=1 // pred_fallthru
      _
    %v23 = vld [vmem:[#allocation2] sm:$0xff]
    %v24 = vlaneseq
    %v25 = vand.u32 %v24, 127
    %vm26 = vcmp.lt.s32.totalorder %v25, 0
    %v27 = vsub.s32 0, %v25
    %v28 = vsel %vm26, %v27, %v25
    %v29 = vshrl.u32 %v28, 2
    %v30 = vand.u32 %v28, 3
    %v31 = vsub.s32 0, %v30
    %v32 = vsel %vm26, %v31, %v30
    %vm33 = vcmp.ne.s32.totalorder %v32, 0
    %vm34 = vcmp.lt.s32.totalorder %v32, 0
    %vm35 = vmand %vm34, %vm33
    %v36 = vadd.s32 %v32, 4
    %v37 = vsel %vm35, %v36, %v32
    %vm38 = vcmp.ge.s32.totalorder %v37, 1
    %39 = vrot.lane.b32.xlu0 %v23, 1
    %v40 = vpop.permute.xlu0 %39
    %v41 = vsel %vm38, 1, 0
    %vm42 = vcmp.eq.s32.totalorder %v41, 1
    %v43 = vsel %vm42, %v40, %v23
    %vm44 = vcmp.ge.s32.totalorder %v37, 2
    %45 = vrot.lane.b32.xlu0 %v43, 2
    %v46 = vpop.permute.xlu0 %45
    %v47 = vsel %vm44, 1, 0
    %vm48 = vcmp.eq.s32.totalorder %v47, 1
    %v49 = vsel %vm48, %v46, %v43
    %50 = vst [vmem:[#allocation5] sm:$0xff] %v49
    // Predicated region
    $region10: #{tpu_custom_call.1} parent=1 // pred_check
      _
    $region11: #{tpu_custom_call.1} parent=1 // pred_check_branch
      %52 = sbr.rel (0) target = $region13
    $region12: #{tpu_custom_call.1} parent=1 // pred_region
      %54 = vsyncadd [#allocation4], 0
      %s56 = sshll.u32 [#allocation5], 4
      %s57 = int_to_ptr.vmem [resolvable:$true] %s56
      %s58 = sshll.u32 %s1, 4
      %s59 = int_to_ptr.hbm [resolvable:$true] %s58
      %61 = dma.vmem_to_hbm [thread:$0]  %s57, 128, %s59, [#allocation4]
    $region13: #{tpu_custom_call.1} parent=1 // pred_fallthru
      _
    // Predicated region
    $region14: #{tpu_custom_call.1} parent=1 // pred_check
      _
    $region15: #{tpu_custom_call.1} parent=1 // pred_check_branch
      %63 = sbr.rel (0) target = $region17
    $region16: #{tpu_custom_call.1} parent=1 // pred_region
      %65 = dma.done [#allocation4], 128
    $region17: #{tpu_custom_call.1} parent=1 // pred_fallthru
      _
    %66 = vsyncpa [#allocation3], 1
    %67 = vsyncpa [#allocation4], 1

</llo_original>
